<compile_context>
chip_gen: v7x
topology: tpu7x:2x2x1
jax: 0.10.0
libtpu: 0.0.40
codegen_flags: <defaults>
</compile_context>

<pallas_src>
import functools

import jax
import jax.numpy as jnp
from jax.experimental import pallas as pl
from jax.experimental.pallas import tpu as pltpu

BN_EPS = 1e-5  # nn.BatchNorm1d default


def _round_up(v, m):
    return (v + m - 1) // m * m


def _tpu_vmem_bytes():
    try:
        return int(pltpu.get_tpu_info().vmem_capacity_bytes)
    except Exception:
        return 64 * 1024 * 1024  # conservative default (v7x per-TC VMEM)


def _pick_time_tile(n_rows, cap):
    """Time-tile rows: multiple of 16 (bf16 sublane pairs), ideally dividing n_rows."""
    cap = max(16, cap - cap % 16)
    if n_rows <= cap:
        return _round_up(n_rows, 16)
    # Prefer an exact divisor: no padded frames -> no output slice along time.
    for cand in range(cap, 127, -16):
        if n_rows % cand == 0:
            return cand
    # Otherwise balance the tiles so at most 15 rows of padding are added.
    nt = -(-n_rows // cap)
    return _round_up(-(-n_rows // nt), 16)


def _build_splice(x_ref, xsp_ref, *, l, s, np_pad, feat):
    """Build the (np_pad, l*D) spliced bf16 slab once per batch element.

    Column i*D + d of row r holds x[r*s + i, d], matching the PyTorch context
    splice (context-major, feature-minor), so a single K = l*D dot against the
    transposed weight reproduces splice(x) @ W^T.
    """
    for i in range(l):  # static, small context length
        if s == 1:
            xi = x_ref[pl.ds(i, np_pad), :]
        else:
            # TODO(synk): the subsampling_factor > 1 (strided ref read) path is
            # not exercised by the test below.
            xi = x_ref[pl.ds(i, np_pad, stride=s), :]
        xsp_ref[:, i * feat:(i + 1) * feat] = xi.astype(xsp_ref.dtype)


def _affine_relu_tile(xsp_ref, w_ref, b_ref, t, *, tn, o_pad):
    """relu( splice(x)[time tile t] @ W^T + b ) as one MXU dot, f32 result."""
    base = pl.multiple_of(t * tn, 16)
    xt = xsp_ref[pl.ds(base, tn), :]                      # (tn, l*D) bf16, aligned
    z = jnp.dot(xt, w_ref[...], preferred_element_type=jnp.float32)
    return jnp.maximum(z + b_ref[...], 0.0)


def _stats_kernel(x_ref, w_ref, b_ref, s1_ref, s2_ref, xsp_ref, *,
                  tn, l, s, np_pad, feat, o_pad, n_valid):
    """Phase 1: per-(batch, channel) sum / sum-of-squares of relu(splice(x) W^T + b).

    Stats accumulate in the resident output blocks across the time-tile axis;
    only one small (1, o_pad) pair per batch element is written back to HBM.
    """
    t = pl.program_id(1)

    @pl.when(t == 0)
    def _():
        _build_splice(x_ref, xsp_ref, l=l, s=s, np_pad=np_pad, feat=feat)
        s1_ref[...] = jnp.zeros_like(s1_ref)
        s2_ref[...] = jnp.zeros_like(s2_ref)

    z = _affine_relu_tile(xsp_ref, w_ref, b_ref, t, tn=tn, o_pad=o_pad)
    if n_valid != np_pad:  # mask frames created by the time padding
        row = jax.lax.broadcasted_iota(jnp.int32, (tn, 1), 0) + t * tn
        z = jnp.where(row < n_valid, z, 0.0)
    s1_ref[...] += jnp.sum(z, axis=0, keepdims=True)
    s2_ref[...] += jnp.sum(z * z, axis=0, keepdims=True)


def _normalize_kernel(x_ref, w_ref, b_ref, m_ref, r_ref, o_ref, xsp_ref, *,
                      tn, l, s, np_pad, feat, o_pad):
    """Phase 2: recompute affine+ReLU (MXU-cheap) and write (z - mean) * rstd once."""
    t = pl.program_id(1)

    @pl.when(t == 0)
    def _():
        _build_splice(x_ref, xsp_ref, l=l, s=s, np_pad=np_pad, feat=feat)

    z = _affine_relu_tile(xsp_ref, w_ref, b_ref, t, tn=tn, o_pad=o_pad)
    o_ref[...] = ((z - m_ref[...]) * r_ref[...]).astype(o_ref.dtype)


def tdnn_batchnorm(x, weight, bias, *, context_len=1, subsampling_factor=1,
                   out_dtype=jnp.float32):
    """Forward pass of TDNNBatchNorm (training-mode batch statistics).

    x:      (mb, T, D) float32
    weight: (output_dim, D * context_len) float32
    bias:   (output_dim,) float32
    returns (mb, N', output_dim), N' = ceil((T - context_len + 1) / subsampling_factor)
    """
    mb, T, D = x.shape
    l = int(context_len)
    s = int(subsampling_factor)
    N = T - l + 1
    Np = -(-N // s)
    O = weight.shape[0]
    o_pad = _round_up(O, 128)                 # lane-dense output / matmul N dim

    phys_vmem = _tpu_vmem_bytes()
    # v5e/v6e (128 MiB VMEM) afford bigger time tiles than v7x (64 MiB / TC).
    tile_cap = 1024 if (phys_vmem >= 96 * 1024 * 1024 and o_pad <= 512) else 512
    vmem_limit = int(min(phys_vmem * 3 // 4, 96 * 1024 * 1024))

    tn = _pick_time_tile(Np, tile_cap)
    nt = -(-Np // tn)
    np_pad = nt * tn
    t_pad = _round_up((np_pad - 1) * s + l, 16)   # covers every shifted read; >= T

    # bf16 MXU operands; statistics / normalization math stays in f32.
    x_p = jnp.pad(x, ((0, 0), (0, t_pad - T), (0, 0))).astype(jnp.bfloat16)
    # (O, l*D) -> (l*D, o_pad): contraction axis matches the spliced slab layout.
    w2 = jnp.pad(weight.T, ((0, 0), (0, o_pad - O))).astype(jnp.bfloat16)
    b_p = jnp.pad(bias, (0, o_pad - O)).reshape(1, o_pad).astype(jnp.float32)

    # x block index is constant along the (minor) time-tile axis: one whole-
    # utterance DMA per batch element; weight / bias / stats vectors are
    # grid-constant.
    x_spec = pl.BlockSpec((None, t_pad, D), lambda b, t: (b, 0, 0))
    w_spec = pl.BlockSpec((l * D, o_pad), lambda b, t: (0, 0))
    v_spec = pl.BlockSpec((1, o_pad), lambda b, t: (0, 0))
    st_spec = pl.BlockSpec((None, 1, o_pad), lambda b, t: (b, 0, 0))
    # Batch is "parallel" (v7x megacore shards batch -> no duplicated x DMA);
    # time tiles are "arbitrary" (splice slab + phase-1 stats carry state).
    cparams = pltpu.CompilerParams(
        dimension_semantics=("parallel", "arbitrary"),
        vmem_limit_bytes=vmem_limit)
    # TODO(synk): on v7x, pipeline_mode=pl.Buffered(1) on the grid-constant x/w
    # specs would free a few extra MiB of VMEM (double-buffering them buys nothing).

    splice_scratch = pltpu.VMEM((np_pad, l * D), jnp.bfloat16)

    # ---- Phase 1: per-batch per-channel partial sums -------------------------
    ssum, ssq = pl.pallas_call(
        functools.partial(_stats_kernel, tn=tn, l=l, s=s, np_pad=np_pad,
                          feat=D, o_pad=o_pad, n_valid=Np),
        out_shape=(jax.ShapeDtypeStruct((mb, 1, o_pad), jnp.float32),
                   jax.ShapeDtypeStruct((mb, 1, o_pad), jnp.float32)),
        grid=(mb, nt),
        in_specs=[x_spec, w_spec, v_spec],
        out_specs=(st_spec, st_spec),
        scratch_shapes=[splice_scratch],
        compiler_params=cparams,
    )(x_p, w2, b_p)

    # Finalize BatchNorm statistics (tiny, plain XLA).
    # TODO(synk): E[z^2] - E[z]^2 in f32 can lose precision for very large mb*N
    # with mean >> std; use a shifted / two-pass reduction if exact large-batch
    # parity with PyTorch is required.
    cnt = float(mb * Np)
    mean2 = jnp.sum(ssum, axis=0) / cnt                          # (1, o_pad)
    var2 = jnp.maximum(jnp.sum(ssq, axis=0) / cnt - mean2 * mean2, 0.0)
    rstd2 = jax.lax.rsqrt(var2 + BN_EPS)                         # (1, o_pad)

    # ---- Phase 2: recompute affine+ReLU, normalize, write output once --------
    y = pl.pallas_call(
        functools.partial(_normalize_kernel, tn=tn, l=l, s=s, np_pad=np_pad,
                          feat=D, o_pad=o_pad),
        out_shape=jax.ShapeDtypeStruct((mb, np_pad, o_pad), out_dtype),
        grid=(mb, nt),
        in_specs=[x_spec, w_spec, v_spec, v_spec, v_spec],
        out_specs=pl.BlockSpec((None, tn, o_pad), lambda b, t: (b, t, 0)),
        scratch_shapes=[splice_scratch],
        compiler_params=cparams,
    )(x_p, w2, b_p, mean2, rstd2)

    if np_pad != Np or o_pad != O:
        y = y[:, :Np, :O]     # only emitted when padding was unavoidable
    return y


def _reference(x, weight, bias, *, context_len=1, subsampling_factor=1):
    """Pure-JAX f32 reference mirroring the PyTorch forward semantics."""
    mb, T, D = x.shape
    l = context_len
    N = T - l + 1
    ctx = jnp.concatenate([x[:, i:i + N, :] for i in range(l)], axis=-1)
    if subsampling_factor > 1:
        ctx = ctx[:, ::subsampling_factor, :]
    z = jnp.einsum("bnk,ok->bno", ctx, weight) + bias[None, None, :]
    z = jnp.maximum(z, 0.0)
    mean = jnp.mean(z, axis=(0, 1), keepdims=True)
    var = jnp.mean((z - mean) ** 2, axis=(0, 1), keepdims=True)
    return (z - mean) * jax.lax.rsqrt(var + BN_EPS)


if __name__ == "__main__":
    # Small, module-consistent shapes.
    mb, T, D = 2, 16, 16
    context_len = 3
    subsampling_factor = 1
    output_dim = 32
    in_dim = D * context_len

    key = jax.random.PRNGKey(0)
    kx, kw, kb = jax.random.split(key, 3)
    x = jax.random.normal(kx, (mb, T, D), dtype=jnp.float32)
    weight = jax.random.normal(kw, (output_dim, in_dim), dtype=jnp.float32) * 0.1
    bias = jax.random.normal(kb, (output_dim,), dtype=jnp.float32) * 0.1

    out = tdnn_batchnorm(
        x, weight, bias,
        context_len=context_len, subsampling_factor=subsampling_factor)
    out = jax.block_until_ready(out)

    ref = _reference(
        x, weight, bias,
        context_len=context_len, subsampling_factor=subsampling_factor)

    assert out.shape == (mb, T - context_len + 1, output_dim), out.shape
    # bf16 MXU inputs => relaxed tolerance vs the pure-f32 reference.  Outputs
    # are standardized (unit variance), so abs error is the relevant metric.
    abs_err = jnp.abs(out - ref)
    max_err = float(jnp.max(abs_err))
    mean_err = float(jnp.mean(abs_err))
    assert max_err < 7.5e-2, max_err
    assert mean_err < 1.5e-2, mean_err
    print("KERNEL_OK")
</pallas_src>

<mosaic_0001>
module attributes {stable_mosaic.version = 11 : i64} {
  func.func @_stats_kernel(%arg0: i32, %arg1: i32, %arg2: memref<1x32x16xbf16, #tpu.memory_space<vmem>>, %arg3: memref<48x128xbf16, #tpu.memory_space<vmem>>, %arg4: memref<1x128xf32, #tpu.memory_space<vmem>>, %arg5: memref<1x1x128xf32, #tpu.memory_space<vmem>>, %arg6: memref<1x1x128xf32, #tpu.memory_space<vmem>>, %arg7: memref<16x48xbf16, #tpu.memory_space<vmem>>) attributes {dimension_semantics = [#tpu.dimension_semantics<parallel>, #tpu.dimension_semantics<arbitrary>], iteration_bounds = array<i64: 2, 1>, scalar_prefetch = 0 : i64, scratch_operands = 1 : i64, tpu.core_type = #tpu.core_type<tc>, window_params = [{transform_indices = @transform_0, window_bounds = array<i64: 1, 32, 16>}, {pipeline_mode = #tpu.pipeline_mode<synchronous>, transform_indices = @transform_1, window_bounds = array<i64: 48, 128>}, {pipeline_mode = #tpu.pipeline_mode<synchronous>, transform_indices = @transform_2, window_bounds = array<i64: 1, 128>}, {transform_indices = @transform_3, window_bounds = array<i64: 1, 1, 128>}, {transform_indices = @transform_4, window_bounds = array<i64: 1, 1, 128>}]} {
    %c0_i32 = arith.constant 0 : i32
    %0 = arith.cmpi eq, %arg1, %c0_i32 : i32
    %1 = arith.extui %0 : i1 to i32
    %c0_i32_0 = arith.constant 0 : i32
    %2 = arith.cmpi ne, %1, %c0_i32_0 : i32
    scf.if %2 {
      %c0_22 = arith.constant 0 : index
      %c0_23 = arith.constant 0 : index
      %c0_24 = arith.constant 0 : index
      %41 = vector.load %arg2[%c0_22, %c0_23, %c0_24] : memref<1x32x16xbf16, #tpu.memory_space<vmem>>, vector<1x16x16xbf16>
      %42 = vector.shape_cast %41 : vector<1x16x16xbf16> to vector<16x16xbf16>
      %c0_25 = arith.constant 0 : index
      %c0_26 = arith.constant 0 : index
      %43 = vector.load %arg7[%c0_25, %c0_26] : memref<16x48xbf16, #tpu.memory_space<vmem>>, vector<16x16xbf16>
      tpu.vector_store %arg7[%c0_25, %c0_26], %42 {strides = array<i32>} : memref<16x48xbf16, #tpu.memory_space<vmem>>, vector<16x16xbf16>,
      %c0_27 = arith.constant 0 : index
      %c1 = arith.constant 1 : index
      %c0_28 = arith.constant 0 : index
      %44 = vector.load %arg2[%c0_27, %c1, %c0_28] : memref<1x32x16xbf16, #tpu.memory_space<vmem>>, vector<1x16x16xbf16>
      %45 = vector.shape_cast %44 : vector<1x16x16xbf16> to vector<16x16xbf16>
      %c0_29 = arith.constant 0 : index
      %c16 = arith.constant 16 : index
      %46 = vector.load %arg7[%c0_29, %c16] : memref<16x48xbf16, #tpu.memory_space<vmem>>, vector<16x16xbf16>
      tpu.vector_store %arg7[%c0_29, %c16], %45 {strides = array<i32>} : memref<16x48xbf16, #tpu.memory_space<vmem>>, vector<16x16xbf16>,
      %c0_30 = arith.constant 0 : index
      %c2 = arith.constant 2 : index
      %c0_31 = arith.constant 0 : index
      %47 = vector.load %arg2[%c0_30, %c2, %c0_31] : memref<1x32x16xbf16, #tpu.memory_space<vmem>>, vector<1x16x16xbf16>
      %48 = vector.shape_cast %47 : vector<1x16x16xbf16> to vector<16x16xbf16>
      %c0_32 = arith.constant 0 : index
      %c32 = arith.constant 32 : index
      %49 = vector.load %arg7[%c0_32, %c32] : memref<16x48xbf16, #tpu.memory_space<vmem>>, vector<16x16xbf16>
      tpu.vector_store %arg7[%c0_32, %c32], %48 {strides = array<i32>} : memref<16x48xbf16, #tpu.memory_space<vmem>>, vector<16x16xbf16>,
      %cst_33 = arith.constant 0.000000e+00 : f32
      %50 = vector.broadcast %cst_33 : f32 to vector<1x128xf32>
      %c0_34 = arith.constant 0 : index
      %c0_35 = arith.constant 0 : index
      %c0_36 = arith.constant 0 : index
      %51 = vector.load %arg5[%c0_34, %c0_35, %c0_36] : memref<1x1x128xf32, #tpu.memory_space<vmem>>, vector<1x1x128xf32>
      %52 = vector.shape_cast %51 : vector<1x1x128xf32> to vector<1x128xf32>
      %53 = vector.shape_cast %50 : vector<1x128xf32> to vector<1x1x128xf32>
      tpu.vector_store %arg5[%c0_34, %c0_35, %c0_36], %53 {strides = array<i32>} : memref<1x1x128xf32, #tpu.memory_space<vmem>>, vector<1x1x128xf32>,
      %cst_37 = arith.constant 0.000000e+00 : f32
      %54 = vector.broadcast %cst_37 : f32 to vector<1x128xf32>
      %c0_38 = arith.constant 0 : index
      %c0_39 = arith.constant 0 : index
      %c0_40 = arith.constant 0 : index
      %55 = vector.load %arg6[%c0_38, %c0_39, %c0_40] : memref<1x1x128xf32, #tpu.memory_space<vmem>>, vector<1x1x128xf32>
      %56 = vector.shape_cast %55 : vector<1x1x128xf32> to vector<1x128xf32>
      %57 = vector.shape_cast %54 : vector<1x128xf32> to vector<1x1x128xf32>
      tpu.vector_store %arg6[%c0_38, %c0_39, %c0_40], %57 {strides = array<i32>} : memref<1x1x128xf32, #tpu.memory_space<vmem>>, vector<1x1x128xf32>,
    } else {
    }
    %c16_i32 = arith.constant 16 : i32
    %3 = arith.muli %arg1, %c16_i32 : i32
    %4 = tpu.assume_multiple %3, 16 : i32
    %5 = arith.index_cast %4 : i32 to index
    %c0 = arith.constant 0 : index
    %6 = vector.load %arg7[%5, %c0] : memref<16x48xbf16, #tpu.memory_space<vmem>>, vector<16x48xbf16>
    %c0_1 = arith.constant 0 : index
    %c0_2 = arith.constant 0 : index
    %7 = vector.load %arg3[%c0_1, %c0_2] : memref<48x128xbf16, #tpu.memory_space<vmem>>, vector<48x128xbf16>
    %cst = arith.constant dense<0.000000e+00> : vector<16x128xf32>
    %8 = tpu.matmul %6, %7, %cst {dimension_numbers = #tpu.dot_dimension_numbers<[1], [0], [0], [1], [0, 0, 1, 1], [], []>} : vector<16x48xbf16>, vector<48x128xbf16>, vector<16x128xf32> -> vector<16x128xf32>
    %c0_3 = arith.constant 0 : index
    %c0_4 = arith.constant 0 : index
    %9 = vector.load %arg4[%c0_3, %c0_4] : memref<1x128xf32, #tpu.memory_space<vmem>>, vector<1x128xf32>
    %10 = vector.broadcast %9 : vector<1x128xf32> to vector<16x128xf32>
    %11 = arith.addf %8, %10 : vector<16x128xf32>
    %cst_5 = arith.constant 0.000000e+00 : f32
    %12 = vector.broadcast %cst_5 : f32 to vector<16x128xf32>
    %13 = arith.maximumf %11, %12 : vector<16x128xf32>
    %14 = tpu.iota {dimensions = array<i32: 0>} : vector<16x1xi32>
    %c16_i32_6 = arith.constant 16 : i32
    %15 = arith.muli %arg1, %c16_i32_6 : i32
    %16 = vector.broadcast %15 : i32 to vector<16x1xi32>
    %17 = arith.addi %14, %16 : vector<16x1xi32>
    %c14_i32 = arith.constant 14 : i32
    %18 = vector.broadcast %c14_i32 : i32 to vector<16x1xi32>
    %19 = arith.cmpi slt, %17, %18 : vector<16x1xi32>
    %cst_7 = arith.constant 0.000000e+00 : f32
    %20 = vector.shape_cast %19 : vector<16x1xi1> to vector<16x1xi1>
    %21 = vector.broadcast %20 : vector<16x1xi1> to vector<16x128xi1>
    %22 = vector.broadcast %cst_7 : f32 to vector<16x128xf32>
    %23 = arith.select %21, %13, %22 : vector<16x128xi1>, vector<16x128xf32>
    %c0_8 = arith.constant 0 : index
    %c0_9 = arith.constant 0 : index
    %c0_10 = arith.constant 0 : index
    %24 = vector.load %arg5[%c0_8, %c0_9, %c0_10] : memref<1x1x128xf32, #tpu.memory_space<vmem>>, vector<1x1x128xf32>
    %25 = vector.shape_cast %24 : vector<1x1x128xf32> to vector<1x128xf32>
    %cst_11 = arith.constant dense<0.000000e+00> : vector<128xf32>
    %26 = vector.multi_reduction <add>, %23, %cst_11 [0] : vector<16x128xf32> to vector<128xf32>
    %27 = vector.shape_cast %26 : vector<128xf32> to vector<1x128xf32>
    %28 = arith.addf %25, %27 : vector<1x128xf32>
    %c0_12 = arith.constant 0 : index
    %c0_13 = arith.constant 0 : index
    %c0_14 = arith.constant 0 : index
    %29 = vector.load %arg5[%c0_12, %c0_13, %c0_14] : memref<1x1x128xf32, #tpu.memory_space<vmem>>, vector<1x1x128xf32>
    %30 = vector.shape_cast %29 : vector<1x1x128xf32> to vector<1x128xf32>
    %31 = vector.shape_cast %28 : vector<1x128xf32> to vector<1x1x128xf32>
    tpu.vector_store %arg5[%c0_12, %c0_13, %c0_14], %31 {strides = array<i32>} : memref<1x1x128xf32, #tpu.memory_space<vmem>>, vector<1x1x128xf32>,
    %c0_15 = arith.constant 0 : index
    %c0_16 = arith.constant 0 : index
    %c0_17 = arith.constant 0 : index
    %32 = vector.load %arg6[%c0_15, %c0_16, %c0_17] : memref<1x1x128xf32, #tpu.memory_space<vmem>>, vector<1x1x128xf32>
    %33 = vector.shape_cast %32 : vector<1x1x128xf32> to vector<1x128xf32>
    %34 = arith.mulf %23, %23 : vector<16x128xf32>
    %cst_18 = arith.constant dense<0.000000e+00> : vector<128xf32>
    %35 = vector.multi_reduction <add>, %34, %cst_18 [0] : vector<16x128xf32> to vector<128xf32>
    %36 = vector.shape_cast %35 : vector<128xf32> to vector<1x128xf32>
    %37 = arith.addf %33, %36 : vector<1x128xf32>
    %c0_19 = arith.constant 0 : index
    %c0_20 = arith.constant 0 : index
    %c0_21 = arith.constant 0 : index
    %38 = vector.load %arg6[%c0_19, %c0_20, %c0_21] : memref<1x1x128xf32, #tpu.memory_space<vmem>>, vector<1x1x128xf32>
    %39 = vector.shape_cast %38 : vector<1x1x128xf32> to vector<1x128xf32>
    %40 = vector.shape_cast %37 : vector<1x128xf32> to vector<1x1x128xf32>
    tpu.vector_store %arg6[%c0_19, %c0_20, %c0_21], %40 {strides = array<i32>} : memref<1x1x128xf32, #tpu.memory_space<vmem>>, vector<1x1x128xf32>,
    return
  }
  func.func @transform_0(%arg0: i32, %arg1: i32) -> (i32, i32, i32) {
    %c0_i32 = arith.constant 0 : i32
    %c0_i32_0 = arith.constant 0 : i32
    %c0_i32_1 = arith.constant 0 : i32
    return %arg0, %c0_i32, %c0_i32_0 : i32, i32, i32
  }
  func.func @transform_1(%arg0: i32, %arg1: i32) -> (i32, i32) {
    %c0_i32 = arith.constant 0 : i32
    %c0_i32_0 = arith.constant 0 : i32
    %c0_i32_1 = arith.constant 0 : i32
    return %c0_i32, %c0_i32_0 : i32, i32
  }
  func.func @transform_2(%arg0: i32, %arg1: i32) -> (i32, i32) {
    %c0_i32 = arith.constant 0 : i32
    %c0_i32_0 = arith.constant 0 : i32
    %c0_i32_1 = arith.constant 0 : i32
    return %c0_i32, %c0_i32_0 : i32, i32
  }
  func.func @transform_3(%arg0: i32, %arg1: i32) -> (i32, i32, i32) {
    %c0_i32 = arith.constant 0 : i32
    %c0_i32_0 = arith.constant 0 : i32
    %c0_i32_1 = arith.constant 0 : i32
    return %arg0, %c0_i32, %c0_i32_0 : i32, i32, i32
  }
  func.func @transform_4(%arg0: i32, %arg1: i32) -> (i32, i32, i32) {
    %c0_i32 = arith.constant 0 : i32
    %c0_i32_0 = arith.constant 0 : i32
    %c0_i32_1 = arith.constant 0 : i32
    return %arg0, %c0_i32, %c0_i32_0 : i32, i32, i32
  }
}

</mosaic_0001>

<llo_original>
// kernel: tpu_custom_call.1
$region0: #{tpu_custom_call.1}
  #allocation0 [shape = 'u32[]', space=smem, size = 0x4, offset = 0x4, fixed_abs, tag = 'smem constant byte address 0x4 - core index']
  #allocation1 [shape = 'u32[144,128]{1,0:T(1,128)}', space=vmem, size = 0x12000, scoped, tag = 'internal scratch']
  #allocation2 [shape = 'bf16[16,48]{1,0:T(16,128)(2,1)}', space=vmem, size = 0x1000, scoped, tag = 'scratch operand']
  %s0 = inlined_call_operand.vmem [shape: bf16[2,32,16], index: 0, kind: input, shape index: {}]
  %s1 = inlined_call_operand.vmem [shape: bf16[48,128], index: 1, kind: input, shape index: {}]
  %s2 = inlined_call_operand.vmem [shape: f32[1,128], index: 2, kind: input, shape index: {}]
  %s3 = inlined_call_operand.hbm [shape: f32[2,1,128], index: 3, kind: output, shape index: {0}]
  %s4 = inlined_call_operand.hbm [shape: f32[2,1,128], index: 4, kind: output, shape index: {1}]
  %5 = xla_tuple %s3, %s4
  %s6 = sld [smem:[#allocation0]]
  $region57: #{tpu_custom_call.1} parent=0
    _
  %s8 = ssub.s32 1, %s6
  %s9 = scalar_select 0, %s8, %s6
  $region1: #{tpu_custom_call.1} parent=0
    #allocation3 [shape = 'u8[1024]{0}', space=vmem, size = 0x400, scoped, tag = 'output window, operand 0']
    #allocation4 [shape = 's32[2]{0}', space=sflag, size = 0x8, scoped, tag = 'scoped memory for tpu_custom_call.1']
    #allocation5 [shape = 'u8[1024]{0}', space=vmem, size = 0x400, scoped, tag = 'output window, operand 1']
    #allocation6 [shape = 's32[2]{0}', space=sflag, size = 0x8, scoped, tag = 'scoped memory for tpu_custom_call.1']
    %10 = vsyncpa [#allocation4], 0
    %s11 = scalar_lea.sflag [#allocation4], 1
    %12 = vsyncpa %s11, 0
    %13 = vsyncpa [#allocation6], 0
    %s14 = scalar_lea.sflag [#allocation6], 1
    %15 = vsyncpa %s14, 0
    loop: start=0, step=1, limit=4
    $region2: #{tpu_custom_call.1} parent=1 // loop_pre_header
      _
    $region3: #{tpu_custom_call.1} parent=1 // loop_header
      %s17 = sphi 0, %s21
      %p18 = scmp.ge.s32.totalorder %s17, 4
      %s24 = sphi 0, %s36
      %s25 = sphi 0, %s32
      %s26 = sphi 0, %s24
      %s27 = sphi 0, %s25
      %s28 = sphi 0, %s26
      %s29 = sphi 0, %s27
      %s39 = sphi 0, %s41
      %s42 = sphi 0, %s39
      %s43 = sphi 0, %s42
      %s59 = sphi 0, %s43
      %s63 = sphi 0, %s63
      %s65 = sphi 0, %s63
      %s66 = sphi 0, %s65
      %s80 = sphi 0, %s66
      %s84 = sphi 0, %s84
      %s86 = sphi 0, %s84
      %s87 = sphi 0, %s86
      %s101 = sphi 0, %s87
      %s107 = sphi 0, %s109
      %s110 = sphi 0, %s107
      %s111 = sphi 0, %s110
      %s127 = sphi 0, %s111
      %s133 = sphi 0, %s135
      %s136 = sphi 0, %s133
      %s137 = sphi 0, %s136
      %s153 = sphi 0, %s137
    $region4: #{tpu_custom_call.1} parent=1 // loop_header_branch
      %20 = sbr.rel (%p18) target = $region8
    $region5: #{tpu_custom_call.1} parent=1 // loop_body
      %s22 = ssub.s32 %s17, 1
      %s23 = ssub.s32 %s17, 2
      %s30 = sadd.s32 1, %s25
      %p31 = scmp.ge.s32.totalorder %s30, 1
      %s32 = scalar_select %p31, 0, %s30
      %s33 = sadd.s32 1, %s24
      %s34 = scalar_select %p31, %s33, %s24
      %p35 = scmp.ge.s32.totalorder %s34, 2
      %s36 = scalar_select %p35, 0, %s34
      %s37 = ssub.s32 %s24, %s36
      %p38 = scmp.eq.s32.totalorder %s37, 0
      %s40 = sadd.s32 %s39, 1
      %s41 = scalar_select %p38, %s39, %s40
      %p44 = pneg %p38
      %p45 = scmp.eq.s32.totalorder %s17, 1
      %p46 = por %p44, %p45
      %p47 = scmp.ne.s32.totalorder %s39, %s42
      %p48 = scmp.eq.s32.totalorder %s17, 0
      %p49 = por %p47, %p48
      %p50 = scmp.ne.s32.totalorder %s39, %s42
      %p51 = scmp.eq.s32.totalorder %s22, 1
      %p52 = por %p50, %p51
      %p53 = scmp.ne.s32.totalorder %s42, %s43
      %p54 = scmp.eq.s32.totalorder %s22, 0
      %p55 = por %p53, %p54
      %p56 = scmp.ne.s32.totalorder %s42, %s43
      %p57 = scmp.eq.s32.totalorder %s23, 1
      %p58 = por %p56, %p57
      %p60 = scmp.ne.s32.totalorder %s43, %s59
      %p61 = scmp.eq.s32.totalorder %s23, 0
      %p62 = por %p60, %p61
      %s64 = sadd.s32 %s63, 1
      %p67 = scmp.eq.s32.totalorder %s17, 1
      %p68 = scmp.ne.s32.totalorder %s63, %s65
      %p69 = scmp.eq.s32.totalorder %s17, 0
      %p70 = por %p68, %p69
      %p71 = scmp.ne.s32.totalorder %s63, %s65
      %p72 = scmp.eq.s32.totalorder %s22, 1
      %p73 = por %p71, %p72
      %p74 = scmp.ne.s32.totalorder %s65, %s66
      %p75 = scmp.eq.s32.totalorder %s22, 0
      %p76 = por %p74, %p75
      %p77 = scmp.ne.s32.totalorder %s65, %s66
      %p78 = scmp.eq.s32.totalorder %s23, 1
      %p79 = por %p77, %p78
      %p81 = scmp.ne.s32.totalorder %s66, %s80
      %p82 = scmp.eq.s32.totalorder %s23, 0
      %p83 = por %p81, %p82
      %s85 = sadd.s32 %s84, 1
      %p88 = scmp.eq.s32.totalorder %s17, 1
      %p89 = scmp.ne.s32.totalorder %s84, %s86
      %p90 = scmp.eq.s32.totalorder %s17, 0
      %p91 = por %p89, %p90
      %p92 = scmp.ne.s32.totalorder %s84, %s86
      %p93 = scmp.eq.s32.totalorder %s22, 1
      %p94 = por %p92, %p93
      %p95 = scmp.ne.s32.totalorder %s86, %s87
      %p96 = scmp.eq.s32.totalorder %s22, 0
      %p97 = por %p95, %p96
      %p98 = scmp.ne.s32.totalorder %s86, %s87
      %p99 = scmp.eq.s32.totalorder %s23, 1
      %p100 = por %p98, %p99
      %p102 = scmp.ne.s32.totalorder %s87, %s101
      %p103 = scmp.eq.s32.totalorder %s23, 0
      %p104 = por %p102, %p103
      %s105 = ssub.s32 %s24, %s36
      %p106 = scmp.eq.s32.totalorder %s105, 0
      %s108 = sadd.s32 %s107, 1
      %s109 = scalar_select %p106, %s107, %s108
      %p112 = pneg %p106
      %p113 = scmp.eq.s32.totalorder %s17, 1
      %p114 = por %p112, %p113
      %p115 = scmp.ne.s32.totalorder %s107, %s110
      %p116 = scmp.eq.s32.totalorder %s17, 0
      %p117 = por %p115, %p116
      %p118 = scmp.ne.s32.totalorder %s107, %s110
      %p119 = scmp.eq.s32.totalorder %s22, 1
      %p120 = por %p118, %p119
      %p121 = scmp.ne.s32.totalorder %s110, %s111
      %p122 = scmp.eq.s32.totalorder %s22, 0
      %p123 = por %p121, %p122
      %p124 = scmp.ne.s32.totalorder %s110, %s111
      %p125 = scmp.eq.s32.totalorder %s23, 1
      %p126 = por %p124, %p125
      %p128 = scmp.ne.s32.totalorder %s111, %s127
      %p129 = scmp.eq.s32.totalorder %s23, 0
      %p130 = por %p128, %p129
      %s131 = ssub.s32 %s24, %s36
      %p132 = scmp.eq.s32.totalorder %s131, 0
      %s134 = sadd.s32 %s133, 1
      %s135 = scalar_select %p132, %s133, %s134
      %p138 = pneg %p132
      %p139 = scmp.eq.s32.totalorder %s17, 1
      %p140 = por %p138, %p139
      %p141 = scmp.ne.s32.totalorder %s133, %s136
      %p142 = scmp.eq.s32.totalorder %s17, 0
      %p143 = por %p141, %p142
      %p144 = scmp.ne.s32.totalorder %s133, %s136
      %p145 = scmp.eq.s32.totalorder %s22, 1
      %p146 = por %p144, %p145
      %p147 = scmp.ne.s32.totalorder %s136, %s137
      %p148 = scmp.eq.s32.totalorder %s22, 0
      %p149 = por %p147, %p148
      %p150 = scmp.ne.s32.totalorder %s136, %s137
      %p151 = scmp.eq.s32.totalorder %s23, 1
      %p152 = por %p150, %p151
      %p154 = scmp.ne.s32.totalorder %s137, %s153
      %p155 = scmp.eq.s32.totalorder %s23, 0
      %p156 = por %p154, %p155
      %p157 = scmp.le.s32.totalorder 1, %s17
      %p158 = scmp.lt.s32.totalorder %s17, 3
      %p159 = pnand %p157, %p158
      %p160 = pneg %p159
      // Predicated region
      $region9: #{tpu_custom_call.1} parent=5 // pred_check
        _
      $region10: #{tpu_custom_call.1} parent=5 // pred_check_branch
        %162 = sbr.rel (%p159) target = $region12
      $region11: #{tpu_custom_call.1} parent=5 // pred_region
        %s163 = ssub.s32 %s17, 1
        // Predicated region
        $region13: #{tpu_custom_call.1} parent=11 // pred_check
          %p164 = pneg %p76
        $region14: #{tpu_custom_call.1} parent=11 // pred_check_branch
          %166 = sbr.rel (%p164) target = $region16
        $region15: #{tpu_custom_call.1} parent=11 // pred_region
          _
        $region16: #{tpu_custom_call.1} parent=11 // pred_fallthru
          _
        // Predicated region
        $region17: #{tpu_custom_call.1} parent=11 // pred_check
          %p167 = pneg %p97
        $region18: #{tpu_custom_call.1} parent=11 // pred_check_branch
          %169 = sbr.rel (%p167) target = $region20
        $region19: #{tpu_custom_call.1} parent=11 // pred_region
          _
        $region20: #{tpu_custom_call.1} parent=11 // pred_fallthru
          _
      $region12: #{tpu_custom_call.1} parent=5 // pred_fallthru
        _
      %p170 = scmp.lt.s32.totalorder %s17, 2
      // Predicated region
      $region21: #{tpu_custom_call.1} parent=5 // pred_check
        %p171 = pneg %p170
      $region22: #{tpu_custom_call.1} parent=5 // pred_check_branch
        %173 = sbr.rel (%p171) target = $region24
      $region23: #{tpu_custom_call.1} parent=5 // pred_region
        // Predicated region
        $region25: #{tpu_custom_call.1} parent=23 // pred_check
          %p174 = pneg %p49
        $region26: #{tpu_custom_call.1} parent=23 // pred_check_branch
          %176 = sbr.rel (%p174) target = $region28
        $region27: #{tpu_custom_call.1} parent=23 // pred_region
          %p177 = scmp.lt.s32.totalorder %s24, 1
          %s178 = scalar_select %p177, %s24, 1
          %s179 = smul.addr %s178, 4
          %s180 = smul.addr %s179, 4
          %s181 = scalar_lea.vmem %s0, %s180
        $region28: #{tpu_custom_call.1} parent=23 // pred_fallthru
          _
      $region24: #{tpu_custom_call.1} parent=5 // pred_fallthru
        _
      %p182 = scmp.le.s32.totalorder 1, %s17
      %p183 = scmp.lt.s32.totalorder %s17, 3
      %p184 = pnand %p182, %p183
      %p185 = pneg %p184
      // Predicated region
      $region29: #{tpu_custom_call.1} parent=5 // pred_check
        _
      $region30: #{tpu_custom_call.1} parent=5 // pred_check_branch
        %187 = sbr.rel (%p184) target = $region32
      $region31: #{tpu_custom_call.1} parent=5 // pred_region
        %s188 = ssub.s32 %s17, 1
        %p189 = scmp.lt.s32.totalorder %s26, 1
        %s190 = scalar_select %p189, %s26, 1
        %s191 = smul.addr %s190, 4
        %s192 = smul.addr %s191, 4
        %s193 = scalar_lea.vmem %s0, %s192
        %p194 = pneg %p55
        %p195 = pneg %p52
        %p196 = pneg %p76
        %p197 = pneg %p73
        %p198 = pneg %p97
        %p199 = pneg %p94
        %p200 = pneg %p123
        %p201 = pneg %p120
        %s202 = sand.u32 %s110, 1
        %s203 = scalar_lea.sflag [#allocation4], %s202
        %s204 = sand.u32 %s110, 1
        %s205 = scalar_lea.vmem [#allocation3], %s204
        %p206 = pneg %p149
        %p207 = pneg %p146
        %s208 = sand.u32 %s136, 1
        %s209 = scalar_lea.sflag [#allocation6], %s208
        %s210 = sand.u32 %s136, 1
        %s211 = scalar_lea.vmem [#allocation5], %s210
        %p212 = scmp.lt.s32.totalorder %s26, 1
        %s213 = scalar_select %p212, %s26, 1
        %s214 = smul.addr %s213, 4
        %s215 = smul.addr %s214, 4
        %s216 = scalar_lea.vmem %s0, %s215
        %p218 = scmp.eq.s32.totalorder %s27, 0
        // Predicated region
        $region33: #{tpu_custom_call.1} parent=31 // pred_check
          %p219 = pneg %p218
        $region34: #{tpu_custom_call.1} parent=31 // pred_check_branch
          %221 = sbr.rel (%p219) target = $region36
        $region35: #{tpu_custom_call.1} parent=31 // pred_region
          %v222 = vld [vmem:[%s216] sm:$0xf]
          %v223 = vld [vmem:[%s216 + $0x4] sm:$0xf]
          %v226 = vunpack.c.l.b16 %v222
          %v227 = vunpack.c.l.b16 %v223
          %v228 = vpack.c.b16 %v227, %v226
          %vm230 = vcmask 130048
          %231 = vst.msk [vmem:[#allocation2] sm:$0xff] %vm230, %v228
          %v232 = vld [vmem:[%s216] sm:$0xf]
          %v233 = vld [vmem:[%s216 + $0x4] sm:$0xf]
          %v234 = vld [vmem:[%s216 + $0x8] sm:$0x1]
          %v238 = vunpack.c.l.b16 %v232
          %v239 = vunpack.c.l.b16 %v233
          %v240 = vunpack.c.l.b16 %v234
          %v241 = vpack.c.b16 %v239, %v238
          %v242 = vpack.c.b16 %v240, %v240
          %vm243 = vsmask.f32 7424
          %v245 = vshrl.u32 %v241, 16
          %v247 = vshll.u32 %v241, 16
          %v249 = vrot.slane %v247, 1
          %v250 = vor.u32 %v245, %v249
          %v252 = vshll.u32 %v242, 16
          %v254 = vrot.slane %v252, 1
          %v255 = vsel %vm243, %v250, %v254
          %256 = vrot.lane.b32.xlu0 %v255, 16
          %v257 = vpop.permute.xlu0 %256
          %vm259 = vcmask 261248
          %260 = vst.msk [vmem:[#allocation2] sm:$0xff] %vm259, %v257
          %v261 = vld [vmem:[%s216] sm:$0xe]
          %v262 = vld [vmem:[%s216 + $0x4] sm:$0xf]
          %v263 = vld [vmem:[%s216 + $0x8] sm:$0x1]
          %v267 = vunpack.c.l.b16 %v261
          %v268 = vunpack.c.l.b16 %v262
          %v269 = vunpack.c.l.b16 %v263
          %v270 = vpack.c.b16 %v268, %v267
          %v271 = vpack.c.b16 %v269, %v269
          %vm272 = vcmask 1046528
          %v273 = vrot.slane %v270, 1
          %v274 = vrot.slane %v271, 1
          %v275 = vsel %vm272, %v273, %v274
          %276 = vrot.lane.b32.xlu0 %v275, 32
          %v277 = vpop.permute.xlu0 %276
          %vm279 = vcmask 392448
          %280 = vst.msk [vmem:[#allocation2] sm:$0xff] %vm279, %v277
          %281 = vst [vmem:[%s205] sm:$0x1] 0.0
          %282 = vst [vmem:[%s211] sm:$0x1] 0.0
        $region36: #{tpu_custom_call.1} parent=31 // pred_fallthru
          _
        %s283 = smul.u32 %s27, 16
        %s284 = sshra.s32 %s283, 4
        %s285 = sand.u32 %s283, 15
        %s286 = smul.addr %s284, 8
        %s287 = scalar_lea.vmem [#allocation2], %s286
        %v288 = vld [vmem:[%s287] sm:$0xff]
        %v289 = vld [vmem:[%s1] sm:$0xf]
        %v290 = vld [vmem:[%s1 + $0x4] sm:$0xf]
        %v291 = vld [vmem:[%s1 + $0x8] sm:$0xf]
        %v292 = vld [vmem:[%s1 + $0xc] sm:$0xf]
        %v293 = vld [vmem:[%s1 + $0x10] sm:$0xf]
        %v294 = vld [vmem:[%s1 + $0x14] sm:$0xf]
        %v295 = vld [vmem:[%s2] sm:$0x1]
        %v297 = vlaneseq
        %v298 = vshrl.u32 %v297, 7
        %v299 = vsub.s32 0, %v298
        %v300 = vrot.slane %v295, %v299
        %v308 = vunpack.c.l.b16 %v289
        %v309 = vunpack.c.l.b16 %v290
        %v310 = vunpack.c.l.b16 %v291
        %v311 = vunpack.c.l.b16 %v292
        %v312 = vunpack.c.l.b16 %v293
        %v313 = vunpack.c.l.b16 %v294
        %v314 = vpack.c.b16 %v309, %v308
        %v315 = vpack.c.b16 %v311, %v310
        %v316 = vpack.c.b16 %v313, %v312
        %vm320 = vcmask 392192
        %v322 = vsel %vm320, %v288, 0
        %324 = vmatprep.subr.bf16.mxu0 0
        %325 = vmatpush1.bf16.msra.mxu0 %v314
        %326 = vmatprep.subr.bf16.mxu0 0
        %327 = vmatpush1.bf16.msra.mxu0 %v315
        %328 = vmatprep.subr.bf16.mxu0 0
        %329 = vmatpush1.bf16.msra.mxu0 %v316
        %330 = vmatprep.subr.bf16.mxu0 0
        %331 = vmatpush1.bf16.msra.mxu0 0
        %332 = vmatprep.subr.bf16.mxu0 0
        %333 = vmatpush1.bf16.msra.mxu0 0
        %334 = vmatprep.subr.bf16.mxu0 0
        %335 = vmatpush1.bf16.msra.mxu0 0
        %336 = vmatprep.subr.bf16.mxu0 0
        %337 = vmatpush1.bf16.msra.mxu0 0
        %338 = vmatprep.subr.bf16.mxu0 0
        %339 = vmatpush1.bf16.msra.mxu0 0
        %340 = vmatprep.subr.bf16.mxu0 0
        %341 = vmatpush1.bf16.msra.mxu0 0
        %342 = vmatprep.subr.bf16.mxu0 0
        %343 = vmatpush1.bf16.msra.mxu0 0
        %344 = vmatprep.subr.bf16.mxu0 0
        %345 = vmatpush1.bf16.msra.mxu0 0
        %346 = vmatprep.subr.bf16.mxu0 0
        %347 = vmatpush1.bf16.msra.mxu0 0
        %348 = vmatprep.subr.bf16.mxu0 0
        %349 = vmatpush1.bf16.msra.mxu0 0
        %350 = vmatprep.subr.bf16.mxu0 0
        %351 = vmatpush1.bf16.msra.mxu0 0
        %352 = vmatprep.subr.bf16.mxu0 0
        %353 = vmatpush1.bf16.msra.mxu0 0
        %354 = vmatprep.subr.bf16.mxu0 0
        %355 = vmatpush1.bf16.msra.mxu0 0
        %356 = vmatprep.mubr.bf16.mxu0 0
        %357 = vmatmul.mubr.bf16.gmra.mrb[0].mxu0 %v322
        %v358 = vpop.f32.mrb[0].mxu0
        %v359 = vadd.f32 %v300, %v358
        %v360 = vpop.f32.mrb[0].mxu0
        %v361 = vpop.f32.mrb[0].mxu0
        %v362 = vadd.f32 %v300, %v361
        %v363 = vpop.f32.mrb[0].mxu0
        %364 = vdwg.mxu0
        %v365 = vmax.f32 %v359, 0.0
        %v366 = vmax.f32 %v362, 0.0
        %v367 = vlaneseq
        %v368 = vshrl.u32 %v367, 7
        %v369 = vadd.s32 %v368, 8
        %v370 = vstv %s283
        %v371 = vadd.s32 %v368, %v370
        %v372 = vadd.s32 %v369, %v370
        %vm373 = vcmp.lt.s32.totalorder %v371, 14
        %vm374 = vcmp.lt.s32.totalorder %v372, 14
        %v375 = vsel %vm373, 1, 0
        %v376 = vsel %vm374, 1, 0
        %vm377 = vcmp.eq.s32.totalorder %v375, 1
        %vm378 = vcmp.eq.s32.totalorder %v376, 1
        %v379 = vsel %vm377, %v365, 0.0
        %v380 = vsel %vm378, %v366, 0.0
        %v381 = vld [vmem:[%s205] sm:$0x1]
        %v382 = vadd.f32 %v379, %v380
        %v383 = vrot.slane %v382, 4
        %v384 = vadd.f32 %v382, %v383
        %v385 = vrot.slane %v384, 2
        %v386 = vadd.f32 %v384, %v385
        %v387 = vrot.slane %v386, 1
        %v388 = vadd.f32 %v386, %v387
        %v389 = vadd.f32 %v381, %v388
        %390 = vst [vmem:[%s205] sm:$0x1] %v389
        %v391 = vld [vmem:[%s211] sm:$0x1]
        %v392 = vmul.f32 %v379, %v379
        %v393 = vmul.f32 %v380, %v380
        %v394 = vadd.f32 %v392, %v393
        %v395 = vrot.slane %v394, 4
        %v396 = vadd.f32 %v394, %v395
        %v397 = vrot.slane %v396, 2
        %v398 = vadd.f32 %v396, %v397
        %v399 = vrot.slane %v398, 1
        %v400 = vadd.f32 %v398, %v399
        %v401 = vadd.f32 %v391, %v400
        %402 = vst [vmem:[%s211] sm:$0x1] %v401
        %s403 = sand.u32 %s110, 1
        %s404 = scalar_lea.sflag [#allocation4], %s403
        %s405 = sand.u32 %s110, 1
        %s406 = scalar_lea.vmem [#allocation3], %s405
        %s407 = sand.u32 %s136, 1
        %s408 = scalar_lea.sflag [#allocation6], %s407
        %s409 = sand.u32 %s136, 1
        %s410 = scalar_lea.vmem [#allocation5], %s409
        // Predicated region
        $region37: #{tpu_custom_call.1} parent=31 // pred_check
          %p411 = pneg %p120
        $region38: #{tpu_custom_call.1} parent=31 // pred_check_branch
          %413 = sbr.rel (%p411) target = $region40
        $region39: #{tpu_custom_call.1} parent=31 // pred_region
          %s415 = ssub.s32 16, 16
          %416 = vsyncadd %s404, %s415
          %s417 = smul.addr %s26, 16
          %s418 = scalar_lea.hbm %s3, %s417
          %s420 = sshll.u32 %s406, 4
          %s421 = int_to_ptr.vmem [resolvable:$true] %s420
          %423 = dma.vmem_to_hbm [thread:$0]  %s421, 16, %s418, %s404
        $region40: #{tpu_custom_call.1} parent=31 // pred_fallthru
          _
        // Predicated region
        $region41: #{tpu_custom_call.1} parent=31 // pred_check
          %p424 = pneg %p146
        $region42: #{tpu_custom_call.1} parent=31 // pred_check_branch
          %426 = sbr.rel (%p424) target = $region44
        $region43: #{tpu_custom_call.1} parent=31 // pred_region
          %s428 = ssub.s32 16, 16
          %429 = vsyncadd %s408, %s428
          %s430 = smul.addr %s26, 16
          %s431 = scalar_lea.hbm %s4, %s430
          %s433 = sshll.u32 %s410, 4
          %s434 = int_to_ptr.vmem [resolvable:$true] %s433
          %436 = dma.vmem_to_hbm [thread:$0]  %s434, 16, %s431, %s408
        $region44: #{tpu_custom_call.1} parent=31 // pred_fallthru
          _
      $region32: #{tpu_custom_call.1} parent=5 // pred_fallthru
        _
      %p437 = scmp.le.s32.totalorder 2, %s17
      // Predicated region
      $region45: #{tpu_custom_call.1} parent=5 // pred_check
        %p438 = pneg %p437
      $region46: #{tpu_custom_call.1} parent=5 // pred_check_branch
        %440 = sbr.rel (%p438) target = $region48
      $region47: #{tpu_custom_call.1} parent=5 // pred_region
        %s441 = ssub.s32 %s17, 2
        // Predicated region
        $region49: #{tpu_custom_call.1} parent=47 // pred_check
          %p442 = pneg %p126
        $region50: #{tpu_custom_call.1} parent=47 // pred_check_branch
          %444 = sbr.rel (%p442) target = $region52
        $region51: #{tpu_custom_call.1} parent=47 // pred_region
          %s445 = sand.u32 %s111, 1
          %s446 = scalar_lea.sflag [#allocation4], %s445
          %s447 = sand.u32 %s111, 1
          %s448 = scalar_lea.vmem [#allocation3], %s447
          %449 = dma.done %s446, 16
        $region52: #{tpu_custom_call.1} parent=47 // pred_fallthru
          _
        // Predicated region
        $region53: #{tpu_custom_call.1} parent=47 // pred_check
          %p450 = pneg %p152
        $region54: #{tpu_custom_call.1} parent=47 // pred_check_branch
          %452 = sbr.rel (%p450) target = $region56
        $region55: #{tpu_custom_call.1} parent=47 // pred_region
          %s453 = sand.u32 %s137, 1
          %s454 = scalar_lea.sflag [#allocation6], %s453
          %s455 = sand.u32 %s137, 1
          %s456 = scalar_lea.vmem [#allocation5], %s455
          %457 = dma.done %s454, 16
        $region56: #{tpu_custom_call.1} parent=47 // pred_fallthru
          _
      $region48: #{tpu_custom_call.1} parent=5 // pred_fallthru
        _
    $region6: #{tpu_custom_call.1} parent=1 // loop_footer
      %s21 = sadd.s32 1, %s17
    $region7: #{tpu_custom_call.1} parent=1 // loop_footer_branch
      %16 = sbr.rel target = $region3
    $region8: #{tpu_custom_call.1} parent=1 // loop_exit
      _
    %458 = vsyncpa [#allocation4], 1
    %s459 = scalar_lea.sflag [#allocation4], 1
    %460 = vsyncpa %s459, 1
    %461 = vsyncpa [#allocation6], 1
    %s462 = scalar_lea.sflag [#allocation6], 1
    %463 = vsyncpa %s462, 1

</llo_original>
